<compile_context>
chip_gen: v7x
topology: tpu7x:2x2x1
jax: 0.10.0
libtpu: 0.0.40
codegen_flags: <defaults>
</compile_context>

<pallas_src>
import functools

import jax
import jax.numpy as jnp
from jax.experimental import pallas as pl
from jax.experimental.pallas import tpu as pltpu


def _round_up(n: int, m: int) -> int:
    return ((n + m - 1) // m) * m


def _linear_kernel(x_ref, w_ref, b_ref, o_ref, acc_ref, *, rem_k: int):
    # x_ref:  (TB, TK) VMEM (streamed)        w_ref: (Kt, TK) f32 VMEM (resident)
    # b_ref:  (1, 1)  f32 SMEM                o_ref: (TB, 1) VMEM
    # acc_ref:(TB, 128) f32 VMEM scratch (lane-dense accumulator)
    k = pl.program_id(1)
    nk = pl.num_programs(1)
    tk = x_ref.shape[1]
    n_groups = tk // 128

    @pl.when(k == 0)
    def _init():
        acc_ref[...] = jnp.zeros_like(acc_ref)

    def _accumulate(mask_tail: bool):
        x = x_ref[...].astype(jnp.float32)                    # (TB, TK)
        if mask_tail:
            # Zero out-of-range K lanes of the edge tile (content is garbage,
            # possibly NaN/Inf; the zero-padded weight alone is not enough).
            col = jax.lax.broadcasted_iota(jnp.int32, x.shape, dimension=1)
            x = jnp.where(col < rem_k, x, 0.0)
        w = w_ref[pl.ds(k, 1), :]                              # (1, TK) f32, resident
        prod = x * w                                           # VPU
        part = prod[:, 0:128]
        for g in range(1, n_groups):                           # static lane-group tree
            part = part + prod[:, g * 128:(g + 1) * 128]       # pure VPU adds
        acc_ref[...] += part

    if rem_k:
        @pl.when(k < nk - 1)
        def _body_full():
            _accumulate(False)

        @pl.when(k == nk - 1)
        def _body_tail():
            _accumulate(True)
    else:
        _accumulate(False)

    @pl.when(k == nk - 1)
    def _finalize():
        total = jnp.sum(acc_ref[...], axis=-1, keepdims=True)  # single XLU reduce
        o_ref[...] = (total + b_ref[0, 0]).astype(o_ref.dtype)


def linear_strategic_model(x: jax.Array, weight: jax.Array, bias: jax.Array,
                           *, tb: int = 1024, tk: int = 2048) -> jax.Array:
    """y = x @ weight.T + bias  (torch.nn.Linear(in_features, 1, bias=True)).

    x:      (batch, in_features)
    weight: (1, in_features)
    bias:   (1,)
    returns (batch, 1)
    """
    batch, in_features = x.shape
    assert weight.shape == (1, in_features)
    assert bias.shape == (1,)

    itemsize = jnp.dtype(x.dtype).itemsize
    sub_mult = {4: 8, 2: 16, 1: 32}.get(itemsize, 8)   # dtype-aware sublane tile

    tb_eff = _round_up(min(tb, _round_up(batch, sub_mult)), sub_mult)
    tk_eff = _round_up(min(tk, _round_up(in_features, 128)), 128)

    # Prefer >= 2 batch tiles so both v7x TensorCores get work on the
    # "parallel" axis (no-op on v5e/v6e; skipped for tiny batches).
    if batch > sub_mult and pl.cdiv(batch, tb_eff) == 1:
        tb_eff = _round_up(pl.cdiv(batch, 2), sub_mult)

    grid = (pl.cdiv(batch, tb_eff), pl.cdiv(in_features, tk_eff))
    nk = grid[1]
    rem_k = in_features % tk_eff

    # Weight: keep f32 (never downcast to x.dtype), zero-pad K to nk*tk_eff and
    # reshape to (nk, tk_eff) so the whole thing stays VMEM-resident.
    f_pad = nk * tk_eff
    w_p = weight.astype(jnp.float32)
    if f_pad != in_features:
        w_p = jnp.pad(w_p, ((0, 0), (0, f_pad - in_features)))
    w_p = w_p.reshape(nk, tk_eff)

    b_smem = bias.reshape(1, 1).astype(jnp.float32)

    kernel = functools.partial(_linear_kernel, rem_k=rem_k)

    out = pl.pallas_call(
        kernel,
        out_shape=jax.ShapeDtypeStruct((batch, 1), x.dtype),
        grid_spec=pltpu.PrefetchScalarGridSpec(
            num_scalar_prefetch=0,
            grid=grid,
            in_specs=[
                # x: streamed (TB, TK) tiles, edge blocks handled in-kernel.
                pl.BlockSpec((tb_eff, tk_eff), lambda i, k: (i, k)),
                # weight: constant block index -> fetched once, VMEM-resident.
                pl.BlockSpec((nk, tk_eff), lambda i, k: (0, 0)),
                # bias: scalar in SMEM.
                pl.BlockSpec(memory_space=pltpu.MemorySpace.SMEM),
            ],
            out_specs=pl.BlockSpec((tb_eff, 1), lambda i, k: (i, 0)),
            scratch_shapes=[pltpu.VMEM((tb_eff, 128), jnp.float32)],
        ),
        compiler_params=pltpu.CompilerParams(
            dimension_semantics=("parallel", "arbitrary"),
            vmem_limit_bytes=40 * 1024 * 1024,
        ),
        cost_estimate=pl.CostEstimate(
            flops=2 * batch * in_features,
            transcendentals=0,
            bytes_accessed=(batch * in_features * itemsize
                            + f_pad * 4
                            + batch * itemsize),
        ),
    )(x, w_p, b_smem)

    return out


if __name__ == "__main__":
    key = jax.random.PRNGKey(0)
    k_x, k_w, k_b, k_x2 = jax.random.split(key, 4)

    # --- Test 1: small shape, single tile, K-remainder mask (32 < 128) ---
    in_features = 32
    batch = 8
    bound = 1.0 / (in_features ** 0.5)
    weight = jax.random.uniform(k_w, (1, in_features), jnp.float32, -bound, bound)
    bias = jax.random.uniform(k_b, (1,), jnp.float32, -bound, bound)
    x = jax.random.normal(k_x, (batch, in_features), jnp.float32)

    y = linear_strategic_model(x, weight, bias)
    jax.block_until_ready(y)
    y_ref = x @ weight.T + bias
    assert y.shape == (batch, 1)
    assert jnp.allclose(y, y_ref, atol=1e-5, rtol=1e-5), "mismatch vs reference (test 1)"

    # --- Test 2: multi-tile grid with batch AND K remainders (no padding of x) ---
    in_features2, batch2 = 300, 40
    bound2 = 1.0 / (in_features2 ** 0.5)
    weight2 = jax.random.uniform(k_w, (1, in_features2), jnp.float32, -bound2, bound2)
    bias2 = jax.random.uniform(k_b, (1,), jnp.float32, -bound2, bound2)
    x2 = jax.random.normal(k_x2, (batch2, in_features2), jnp.float32)

    y2 = linear_strategic_model(x2, weight2, bias2, tb=16, tk=128)  # grid = (3, 3)
    jax.block_until_ready(y2)
    y2_ref = x2 @ weight2.T + bias2
    assert y2.shape == (batch2, 1)
    assert jnp.allclose(y2, y2_ref, atol=1e-4, rtol=1e-5), "mismatch vs reference (test 2)"

    print("KERNEL_OK")
</pallas_src>

<mosaic_0001>
module attributes {stable_mosaic.version = 11 : i64} {
  func.func @_linear_kernel(%arg0: i32, %arg1: i32, %arg2: memref<8x128xf32, #tpu.memory_space<vmem>>, %arg3: memref<1x128xf32, #tpu.memory_space<vmem>>, %arg4: memref<1x1xf32, #tpu.memory_space<smem>>, %arg5: memref<8x1xf32, #tpu.memory_space<vmem>>, %arg6: memref<8x128xf32, #tpu.memory_space<vmem>>) attributes {dimension_semantics = [#tpu.dimension_semantics<parallel>, #tpu.dimension_semantics<arbitrary>], iteration_bounds = array<i64: 1, 1>, scalar_prefetch = 0 : i64, scratch_operands = 1 : i64, tpu.core_type = #tpu.core_type<tc>, window_params = [{transform_indices = @transform_0, window_bounds = array<i64: 8, 128>}, {pipeline_mode = #tpu.pipeline_mode<synchronous>, transform_indices = @transform_1, window_bounds = array<i64: 1, 128>}, {transform_indices = @transform_2, window_bounds = array<i64: 1, 1>}, {transform_indices = @transform_3, window_bounds = array<i64: 8, 1>}]} {
    %c0_i32 = arith.constant 0 : i32
    %0 = arith.cmpi eq, %arg1, %c0_i32 : i32
    %1 = arith.extui %0 : i1 to i32
    %c0_i32_0 = arith.constant 0 : i32
    %2 = arith.cmpi ne, %1, %c0_i32_0 : i32
    scf.if %2 {
      %cst = arith.constant 0.000000e+00 : f32
      %12 = vector.broadcast %cst : f32 to vector<8x128xf32>
      %c0 = arith.constant 0 : index
      %c0_7 = arith.constant 0 : index
      %13 = vector.load %arg6[%c0, %c0_7] : memref<8x128xf32, #tpu.memory_space<vmem>>, vector<8x128xf32>
      tpu.vector_store %arg6[%c0, %c0_7], %12 {strides = array<i32>} : memref<8x128xf32, #tpu.memory_space<vmem>>, vector<8x128xf32>,
    } else {
    }
    %c0_i32_1 = arith.constant 0 : i32
    %3 = arith.cmpi slt, %arg1, %c0_i32_1 : i32
    %4 = arith.extui %3 : i1 to i32
    %c0_i32_2 = arith.constant 0 : i32
    %5 = arith.cmpi ne, %4, %c0_i32_2 : i32
    scf.if %5 {
      %c0 = arith.constant 0 : index
      %c0_7 = arith.constant 0 : index
      %12 = vector.load %arg2[%c0, %c0_7] : memref<8x128xf32, #tpu.memory_space<vmem>>, vector<8x128xf32>
      %13 = arith.index_cast %arg1 : i32 to index
      %c0_8 = arith.constant 0 : index
      %14 = vector.load %arg3[%13, %c0_8] : memref<1x128xf32, #tpu.memory_space<vmem>>, vector<1x128xf32>
      %15 = vector.broadcast %14 : vector<1x128xf32> to vector<8x128xf32>
      %16 = arith.mulf %12, %15 : vector<8x128xf32>
      %c0_9 = arith.constant 0 : index
      %c0_10 = arith.constant 0 : index
      %17 = vector.load %arg6[%c0_9, %c0_10] : memref<8x128xf32, #tpu.memory_space<vmem>>, vector<8x128xf32>
      %18 = arith.addf %17, %16 : vector<8x128xf32>
      %c0_11 = arith.constant 0 : index
      %c0_12 = arith.constant 0 : index
      %19 = vector.load %arg6[%c0_11, %c0_12] : memref<8x128xf32, #tpu.memory_space<vmem>>, vector<8x128xf32>
      tpu.vector_store %arg6[%c0_11, %c0_12], %18 {strides = array<i32>} : memref<8x128xf32, #tpu.memory_space<vmem>>, vector<8x128xf32>,
    } else {
    }
    %c0_i32_3 = arith.constant 0 : i32
    %6 = arith.cmpi eq, %arg1, %c0_i32_3 : i32
    %7 = arith.extui %6 : i1 to i32
    %c0_i32_4 = arith.constant 0 : i32
    %8 = arith.cmpi ne, %7, %c0_i32_4 : i32
    scf.if %8 {
      %c0 = arith.constant 0 : index
      %c0_7 = arith.constant 0 : index
      %12 = vector.load %arg2[%c0, %c0_7] : memref<8x128xf32, #tpu.memory_space<vmem>>, vector<8x128xf32>
      %13 = tpu.iota {dimensions = array<i32: 1>} : vector<8x128xi32>
      %c32_i32 = arith.constant 32 : i32
      %14 = vector.broadcast %c32_i32 : i32 to vector<8x128xi32>
      %15 = arith.cmpi slt, %13, %14 : vector<8x128xi32>
      %cst = arith.constant 0.000000e+00 : f32
      %16 = vector.broadcast %cst : f32 to vector<8x128xf32>
      %17 = arith.select %15, %12, %16 : vector<8x128xi1>, vector<8x128xf32>
      %18 = arith.index_cast %arg1 : i32 to index
      %c0_8 = arith.constant 0 : index
      %19 = vector.load %arg3[%18, %c0_8] : memref<1x128xf32, #tpu.memory_space<vmem>>, vector<1x128xf32>
      %20 = vector.broadcast %19 : vector<1x128xf32> to vector<8x128xf32>
      %21 = arith.mulf %17, %20 : vector<8x128xf32>
      %c0_9 = arith.constant 0 : index
      %c0_10 = arith.constant 0 : index
      %22 = vector.load %arg6[%c0_9, %c0_10] : memref<8x128xf32, #tpu.memory_space<vmem>>, vector<8x128xf32>
      %23 = arith.addf %22, %21 : vector<8x128xf32>
      %c0_11 = arith.constant 0 : index
      %c0_12 = arith.constant 0 : index
      %24 = vector.load %arg6[%c0_11, %c0_12] : memref<8x128xf32, #tpu.memory_space<vmem>>, vector<8x128xf32>
      tpu.vector_store %arg6[%c0_11, %c0_12], %23 {strides = array<i32>} : memref<8x128xf32, #tpu.memory_space<vmem>>, vector<8x128xf32>,
    } else {
    }
    %c0_i32_5 = arith.constant 0 : i32
    %9 = arith.cmpi eq, %arg1, %c0_i32_5 : i32
    %10 = arith.extui %9 : i1 to i32
    %c0_i32_6 = arith.constant 0 : i32
    %11 = arith.cmpi ne, %10, %c0_i32_6 : i32
    scf.if %11 {
      %c0 = arith.constant 0 : index
      %c0_7 = arith.constant 0 : index
      %12 = vector.load %arg6[%c0, %c0_7] : memref<8x128xf32, #tpu.memory_space<vmem>>, vector<8x128xf32>
      %cst = arith.constant dense<0.000000e+00> : vector<8xf32>
      %13 = vector.multi_reduction <add>, %12, %cst [1] : vector<8x128xf32> to vector<8xf32>
      %14 = vector.shape_cast %13 : vector<8xf32> to vector<8x1xf32>
      %c0_8 = arith.constant 0 : index
      %c0_9 = arith.constant 0 : index
      %15 = memref.load %arg4[%c0_8, %c0_9] : memref<1x1xf32, #tpu.memory_space<smem>>
      %16 = vector.broadcast %15 : f32 to vector<8x1xf32>
      %17 = arith.addf %14, %16 : vector<8x1xf32>
      %c0_10 = arith.constant 0 : index
      %c0_11 = arith.constant 0 : index
      %18 = vector.load %arg5[%c0_10, %c0_11] : memref<8x1xf32, #tpu.memory_space<vmem>>, vector<8x1xf32>
      tpu.vector_store %arg5[%c0_10, %c0_11], %17 {strides = array<i32>} : memref<8x1xf32, #tpu.memory_space<vmem>>, vector<8x1xf32>,
    } else {
    }
    return
  }
  func.func @transform_0(%arg0: i32, %arg1: i32) -> (i32, i32) {
    %c0_i32 = arith.constant 0 : i32
    return %arg0, %arg1 : i32, i32
  }
  func.func @transform_1(%arg0: i32, %arg1: i32) -> (i32, i32) {
    %c0_i32 = arith.constant 0 : i32
    %c0_i32_0 = arith.constant 0 : i32
    %c0_i32_1 = arith.constant 0 : i32
    return %c0_i32, %c0_i32_0 : i32, i32
  }
  func.func @transform_2(%arg0: i32, %arg1: i32) -> (i32, i32) {
    %c0_i32 = arith.constant 0 : i32
    %c0_i32_0 = arith.constant 0 : i32
    %c0_i32_1 = arith.constant 0 : i32
    return %c0_i32, %c0_i32_0 : i32, i32
  }
  func.func @transform_3(%arg0: i32, %arg1: i32) -> (i32, i32) {
    %c0_i32 = arith.constant 0 : i32
    %c0_i32_0 = arith.constant 0 : i32
    return %arg0, %c0_i32 : i32, i32
  }
}

</mosaic_0001>

<llo_original>
// kernel: tpu_custom_call.1
$region0: #{tpu_custom_call.1}
  #allocation0 [shape = 'u32[]', space=smem, size = 0x4, offset = 0x4, fixed_abs, tag = 'smem constant byte address 0x4 - core index']
  #allocation1 [shape = 'u32[144,128]{1,0:T(1,128)}', space=vmem, size = 0x12000, scoped, tag = 'internal scratch']
  #allocation2 [shape = 'f32[8,128]{1,0:T(8,128)}', space=vmem, size = 0x1000, scoped, tag = 'scratch operand']
  #allocation3 [shape = 'f32[1,1]{1,0:T(1,128)S(6)}', space=smem, size = 0x200, scoped, tag = 'scoped memory for tpu_custom_call.1']
  %s0 = inlined_call_operand.hbm [shape: f32[8,32], index: 0, kind: input, shape index: {}]
  %s1 = inlined_call_operand.vmem [shape: f32[1,128], index: 1, kind: input, shape index: {}]
  %s2 = inlined_call_operand.<no memory space> [shape: f32[1,1], index: 2, kind: input, shape index: {}]
  %s3 = inlined_call_operand.vmem [shape: f32[8,1], index: 3, kind: output, shape index: {}]
  %s4 = sld [smem:[#allocation0]]
  $region38: #{tpu_custom_call.1} parent=0
    _
  %s6 = ssub.s32 1, %s4
  %s7 = scalar_select 0, %s6, %s4
  %8 = sst [smem:[#allocation3]] %s2
  $region1: #{tpu_custom_call.1} parent=0
    #allocation4 [shape = 'u8[4096]{0}', space=vmem, size = 0x1000, scoped, tag = 'input window, operand 0, single buffered']
    #allocation5 [shape = 's32[1]{0}', space=sflag, size = 0x4, scoped, tag = 'scoped memory for tpu_custom_call.1']
    %9 = vsyncpa [#allocation5], 0
    // Predicated region
    $region2: #{tpu_custom_call.1} parent=1 // pred_check
      _
    $region3: #{tpu_custom_call.1} parent=1 // pred_check_branch
      %11 = sbr.rel (0) target = $region5
    $region4: #{tpu_custom_call.1} parent=1 // pred_region
      %s13 = ssub.s32 128, 128
      %14 = vsyncadd [#allocation5], %s13
      %s16 = sshll.u32 [#allocation4], 4
      %s17 = int_to_ptr.vmem [resolvable:$true] %s16
      %19 = dma.hbm_to_vmem [thread:$0]  %s0, 128, %s17, [#allocation5]
    $region5: #{tpu_custom_call.1} parent=1 // pred_fallthru
      _
    // Predicated region
    $region6: #{tpu_custom_call.1} parent=1 // pred_check
      _
    $region7: #{tpu_custom_call.1} parent=1 // pred_check_branch
      %21 = sbr.rel (0) target = $region9
    $region8: #{tpu_custom_call.1} parent=1 // pred_region
      _
    $region9: #{tpu_custom_call.1} parent=1 // pred_fallthru
      _
    // Predicated region
    $region10: #{tpu_custom_call.1} parent=1 // pred_check
      _
    $region11: #{tpu_custom_call.1} parent=1 // pred_check_branch
      %23 = sbr.rel (0) target = $region13
    $region12: #{tpu_custom_call.1} parent=1 // pred_region
      _
    $region13: #{tpu_custom_call.1} parent=1 // pred_fallthru
      _
    // Predicated region
    $region14: #{tpu_custom_call.1} parent=1 // pred_check
      _
    $region15: #{tpu_custom_call.1} parent=1 // pred_check_branch
      %25 = sbr.rel (0) target = $region17
    $region16: #{tpu_custom_call.1} parent=1 // pred_region
      %26 = dma.done [#allocation5], 128
    $region17: #{tpu_custom_call.1} parent=1 // pred_fallthru
      _
    %p27 = scmp.eq.s32.totalorder 0, 0
    // Predicated region
    $region18: #{tpu_custom_call.1} parent=1 // pred_check
      %p28 = pneg %p27
    $region19: #{tpu_custom_call.1} parent=1 // pred_check_branch
      %30 = sbr.rel (%p28) target = $region21
    $region20: #{tpu_custom_call.1} parent=1 // pred_region
      %31 = vst [vmem:[#allocation2] sm:$0xff] 0.0
    $region21: #{tpu_custom_call.1} parent=1 // pred_fallthru
      _
    %p32 = scmp.lt.s32.totalorder 0, 0
    // Predicated region
    $region22: #{tpu_custom_call.1} parent=1 // pred_check
      %p33 = pneg %p32
    $region23: #{tpu_custom_call.1} parent=1 // pred_check_branch
      %35 = sbr.rel (%p33) target = $region25
    $region24: #{tpu_custom_call.1} parent=1 // pred_region
      %v36 = vld [vmem:[#allocation4] sm:$0xff]
      %v37 = vld [vmem:[%s1] sm:$0x1]
      %v39 = vlaneseq
      %v40 = vshrl.u32 %v39, 7
      %v41 = vsub.s32 0, %v40
      %v42 = vrot.slane %v37, %v41
      %v44 = vmul.f32 %v36, %v42
      %v45 = vld [vmem:[#allocation2] sm:$0xff]
      %v46 = vadd.f32 %v45, %v44
      %47 = vst [vmem:[#allocation2] sm:$0xff] %v46
    $region25: #{tpu_custom_call.1} parent=1 // pred_fallthru
      _
    // Predicated region
    $region26: #{tpu_custom_call.1} parent=1 // pred_check
      %p48 = pneg %p27
    $region27: #{tpu_custom_call.1} parent=1 // pred_check_branch
      %50 = sbr.rel (%p48) target = $region29
    $region28: #{tpu_custom_call.1} parent=1 // pred_region
      %v51 = vld [vmem:[#allocation4] sm:$0xff]
      %v52 = vlaneseq
      %v53 = vand.u32 %v52, 127
      %vm54 = vcmp.lt.s32.totalorder %v53, 32
      %v55 = vsel %vm54, %v51, 0.0
      %v56 = vld [vmem:[%s1] sm:$0x1]
      %v58 = vlaneseq
      %v59 = vshrl.u32 %v58, 7
      %v60 = vsub.s32 0, %v59
      %v61 = vrot.slane %v56, %v60
      %v63 = vmul.f32 %v55, %v61
      %v64 = vld [vmem:[#allocation2] sm:$0xff]
      %v65 = vadd.f32 %v64, %v63
      %66 = vst [vmem:[#allocation2] sm:$0xff] %v65
      %v67 = vld [vmem:[#allocation2] sm:$0xff]
      %68 = vadd.xlane.f32.xlu0 %v67
      %v69 = vpop.xlane.xlu0 %68
      %s70 = sld [smem:[#allocation3]]
      %v71 = vstv %s70
      %v72 = vadd.f32 %v69, %v71
      %vm73 = vcmask 7168
      %74 = vst.msk [vmem:[%s3] sm:$0xff] %vm73, %v72
    $region29: #{tpu_custom_call.1} parent=1 // pred_fallthru
      _
    // Predicated region
    $region30: #{tpu_custom_call.1} parent=1 // pred_check
      _
    $region31: #{tpu_custom_call.1} parent=1 // pred_check_branch
      %76 = sbr.rel (0) target = $region33
    $region32: #{tpu_custom_call.1} parent=1 // pred_region
      _
    $region33: #{tpu_custom_call.1} parent=1 // pred_fallthru
      _
    // Predicated region
    $region34: #{tpu_custom_call.1} parent=1 // pred_check
      _
    $region35: #{tpu_custom_call.1} parent=1 // pred_check_branch
      %78 = sbr.rel (0) target = $region37
    $region36: #{tpu_custom_call.1} parent=1 // pred_region
      _
    $region37: #{tpu_custom_call.1} parent=1 // pred_fallthru
      _
    %79 = vsyncpa [#allocation5], 1

</llo_original>
